<compile_context>
chip_gen: v6e
topology: v6e:2x2x1
jax: 0.10.0
libtpu: 0.0.40
codegen_flags: <defaults>
</compile_context>

<pallas_src>
import math

import jax
import jax.numpy as jnp
from jax.experimental import pallas as pl
from jax.experimental.pallas import tpu as pltpu


# ----------------------------------------------------------------------------
# Tunables
# ----------------------------------------------------------------------------
_MAX_TILE = 512              # per-edge cap for last-2 transpose tiles (roofline knee)
_MIN_PALLAS_BYTES = 1 << 18  # below ~256 KiB a pallas_call is pure launch overhead
_MIN_GRID_STEPS = 16         # keep v7x's 2 TCs + the double-buffer pipeline busy
_MIN_DMA_CHUNK = 1024        # general path: contiguous-chunk floor (bytes)

_HW_CACHE = None


def _hw_params():
    """Generation-dependent scoped-VMEM limit and per-block byte budget."""
    global _HW_CACHE
    if _HW_CACHE is None:
        try:
            vmem_cap = int(pltpu.get_tpu_info().vmem_capacity_bytes)
        except Exception:   # query unavailable -> stay conservative
            vmem_cap = 0
        if vmem_cap >= 96 * 1024 * 1024:
            # v5e / v6e: 128 MiB physical VMEM -> bigger blocks, higher limit.
            _HW_CACHE = {"vmem_limit": 64 << 20, "block_budget": 4 << 20}
        else:
            # v7x (64 MiB physical) or unknown generation.
            _HW_CACHE = {"vmem_limit": 32 << 20, "block_budget": 2 << 20}
    return _HW_CACHE


# ----------------------------------------------------------------------------
# Kernels
# ----------------------------------------------------------------------------
def _transpose_last2_kernel(x_ref, o_ref):
    # (TN, TA, TB) -> (TN, TB, TA): batched minormost 2-D transpose (XLU).
    o_ref[...] = jnp.swapaxes(x_ref[...], 1, 2)


def _copy_kernel(x_ref, o_ref):
    # Pure copy: the axis swap is done entirely by the output BlockSpec
    # index map (no in-kernel relayout).
    o_ref[...] = x_ref[...]


# ----------------------------------------------------------------------------
# pallas_call wrappers
# ----------------------------------------------------------------------------
def _pick_tile(dim, max_tile=_MAX_TILE, align=128):
    """Tile edge for one transposed axis.

    Full dim if it fits; otherwise a multiple of 128 chosen to (1) minimize the
    number of blocks and (2) among those, minimize the masked tail.  One masked
    tail block is preferred over shrinking every block (640 -> 384+256 rather
    than 5 x 128)."""
    if dim <= max_tile:
        return dim
    best, best_key = align, None
    for cand in range(align, max_tile + 1, align):
        nblk = -(-dim // cand)
        waste = nblk * cand - dim
        key = (nblk, waste, -cand)
        if best_key is None or key < best_key:
            best_key, best = key, cand
    return best


def _pallas_transpose_last2(x3):
    """(N, A, B) -> (N, B, A) via tiled, N-batched 2-D transposes."""
    N, A, B = x3.shape
    hw = _hw_params()
    itemsize = x3.dtype.itemsize
    TA = _pick_tile(A)
    TB = _pick_tile(B)
    tile_bytes = TA * TB * itemsize
    ga, gb = pl.cdiv(A, TA), pl.cdiv(B, TB)
    # Batch leading indices per grid step to amortize the ~0.35us/step cost,
    # but never collapse the grid below _MIN_GRID_STEPS (megacore + pipeline).
    TN = int(max(1, min(N, hw["block_budget"] // max(tile_bytes, 1))))
    while TN > 1 and pl.cdiv(N, TN) * ga * gb < _MIN_GRID_STEPS:
        TN = max(1, TN // 2)
    grid = (pl.cdiv(N, TN), ga, gb)
    return pl.pallas_call(
        _transpose_last2_kernel,
        out_shape=jax.ShapeDtypeStruct((N, B, A), x3.dtype),
        grid=grid,
        in_specs=[pl.BlockSpec((TN, TA, TB), lambda n, a, b: (n, a, b))],
        out_specs=pl.BlockSpec((TN, TB, TA), lambda n, a, b: (n, b, a)),
        compiler_params=pltpu.CompilerParams(
            dimension_semantics=("parallel", "parallel", "parallel"),
            vmem_limit_bytes=hw["vmem_limit"]),
        cost_estimate=pl.CostEstimate(
            flops=0, transcendentals=0,
            bytes_accessed=int(2 * x3.size * itemsize)),
    )(x3)


def _pallas_transpose_general(x5):
    """(N, A, M, B, I) -> (N, B, M, A, I); requires I % 128 == 0.

    The trailing dim is split into (I//128, 128) so the minormost block dims
    stay full / lane-aligned; the A<->B swap is expressed purely via the output
    BlockSpec index map with a copy-kernel body.  The I1 axis is tiled as well
    so block bytes stay under the per-generation budget even for huge inner
    dims (bounded footprint with in+out double buffering on v7x's 64 MiB VMEM).
    """
    N, A, M, B, I = x5.shape
    hw = _hw_params()
    budget = hw["block_budget"]
    itemsize = x5.dtype.itemsize
    I1 = I // 128
    x6 = x5.reshape(N, A, M, B, I1, 128)

    lane_bytes = 128 * itemsize
    TI1 = int(max(1, min(I1, budget // lane_bytes)))
    row_bytes = TI1 * lane_bytes                       # bytes per (n,a,m,b) row chunk
    TM = int(max(1, min(M, budget // max(row_bytes, 1))))
    TN = int(max(1, min(N, budget // max(TM * row_bytes, 1))))

    gi = pl.cdiv(I1, TI1)

    def nsteps(tn, tm):
        return pl.cdiv(N, tn) * A * B * pl.cdiv(M, tm) * gi

    while TN > 1 and nsteps(TN, TM) < _MIN_GRID_STEPS:
        TN = max(1, TN // 2)
    while TM > 1 and nsteps(TN, TM) < _MIN_GRID_STEPS:
        TM = max(1, TM // 2)

    grid = (pl.cdiv(N, TN), A, B, pl.cdiv(M, TM), gi)
    out6 = pl.pallas_call(
        _copy_kernel,
        out_shape=jax.ShapeDtypeStruct((N, B, M, A, I1, 128), x5.dtype),
        grid=grid,
        in_specs=[pl.BlockSpec((TN, 1, TM, 1, TI1, 128),
                               lambda n, a, b, m, i: (n, a, m, b, i, 0))],
        out_specs=pl.BlockSpec((TN, 1, TM, 1, TI1, 128),
                               lambda n, a, b, m, i: (n, b, m, a, i, 0)),
        compiler_params=pltpu.CompilerParams(
            dimension_semantics=("parallel",) * 5,
            vmem_limit_bytes=hw["vmem_limit"]),
        cost_estimate=pl.CostEstimate(
            flops=0, transcendentals=0,
            bytes_accessed=int(2 * x5.size * itemsize)),
    )(x6)
    return out6.reshape(N, B, M, A, I)


# ----------------------------------------------------------------------------
# Module equivalent
# ----------------------------------------------------------------------------
class Transpose:
    """JAX/Pallas equivalent of PyTorch `Transpose(*dims, contiguous=...)`."""

    def __init__(self, *dims, contiguous=False):
        assert len(dims) == 2, "Transpose expects exactly two dims"
        self.dims = dims
        # `.contiguous()` is a no-op: Pallas output is always dense/contiguous.
        self.contiguous = contiguous

    def __call__(self, x):
        nd = x.ndim
        d0, d1 = (d % nd for d in self.dims)
        if d0 == d1:
            return x
        i, j = min(d0, d1), max(d0, d1)
        shape = x.shape
        out_shape = (shape[:i] + (shape[j],) + shape[i + 1:j]
                     + (shape[i],) + shape[j + 1:])

        itemsize = jnp.dtype(x.dtype).itemsize
        if x.size == 0 or x.size * itemsize < _MIN_PALLAS_BYTES:
            # Tiny tensors: a 1-step pallas_call is pure launch overhead and
            # XLA can fuse the transpose away entirely.
            return jnp.swapaxes(x, d0, d1)

        outer = math.prod(shape[:i])
        A = shape[i]
        mid = math.prod(shape[i + 1:j])
        B = shape[j]
        inner = math.prod(shape[j + 1:])

        if mid == 1 and inner == 1:
            # Canonical case: Transpose(1, 2) on (B, S, H), Transpose(-1, -2).
            # Skip Pallas when the output lane dim (A) would force masked
            # vst.msk partial stores on every vreg (~4.5x penalty): A < 128,
            # or A not 128-aligned while small enough that every block is the
            # (masked) full dim.
            if A < 128 or (A % 128 != 0 and A <= _MAX_TILE):
                return jnp.swapaxes(x, d0, d1)
            y = _pallas_transpose_last2(x.reshape(outer, A, B))
        elif inner % 128 == 0 and inner * itemsize >= _MIN_DMA_CHUNK:
            # Lane-dense general pair of dims with reasonably sized contiguous
            # DMA chunks per (n, a, m, b) row.
            y = _pallas_transpose_general(x.reshape(outer, A, mid, B, inner))
        else:
            # TODO(synk): lane-starved / short-burst general case (trailing
            # extent not 128-aligned, or contiguous chunks < ~1 KiB): a Pallas
            # kernel would be dominated by masked partial stores or tiny
            # strided DMAs on every TPU generation, so defer to XLA here.
            return jnp.swapaxes(x, d0, d1)

        return y.reshape(out_shape)


# ----------------------------------------------------------------------------
# Demo / self-test
# ----------------------------------------------------------------------------
if __name__ == "__main__":
    root = jax.random.PRNGKey(0)
    k1, k2, k3, k4 = jax.random.split(root, 4)

    # Case 1: tiny (batch=2, seq=8, hidden=32) -> XLA fast-path fallback.
    x1 = jax.random.normal(k1, (2, 8, 32), dtype=jnp.float32)
    y1 = jax.block_until_ready(Transpose(1, 2, contiguous=True)(x1))
    assert y1.shape == (2, 32, 8)
    assert jnp.array_equal(y1, jnp.swapaxes(x1, 1, 2))

    # Case 2: Pallas last-2 path (128-aligned non-divisor tiling + N-batching,
    # one masked tail block along the 640 axis).
    x2 = jax.random.normal(k2, (2, 256, 640), dtype=jnp.bfloat16)
    y2 = jax.block_until_ready(Transpose(-1, -2)(x2))
    assert y2.shape == (2, 640, 256)
    assert jnp.array_equal(y2, jnp.swapaxes(x2, -1, -2))

    # Case 3: Pallas general path (non-adjacent dims, lane-dense inner dim).
    x3 = jax.random.normal(k3, (2, 8, 16, 4, 256), dtype=jnp.float32)
    y3 = jax.block_until_ready(Transpose(1, 3)(x3))
    assert y3.shape == (2, 4, 16, 8, 256)
    assert jnp.array_equal(y3, jnp.swapaxes(x3, 1, 3))

    # Case 4: lane-starved / tiny general pair -> XLA fallback.
    x4 = jax.random.normal(k4, (2, 4, 8, 32), dtype=jnp.float32)
    y4 = jax.block_until_ready(Transpose(1, 2)(x4))
    assert y4.shape == (2, 8, 4, 32)
    assert jnp.array_equal(y4, jnp.swapaxes(x4, 1, 2))

    print("KERNEL_OK")
</pallas_src>

<mosaic_0001>
module attributes {stable_mosaic.version = 11 : i64} {
  func.func @_transpose_last2_kernel(%arg0: i32, %arg1: i32, %arg2: i32, %arg3: memref<1x256x384xbf16, #tpu.memory_space<vmem>>, %arg4: memref<1x384x256xbf16, #tpu.memory_space<vmem>>) attributes {dimension_semantics = [#tpu.dimension_semantics<parallel>, #tpu.dimension_semantics<parallel>, #tpu.dimension_semantics<parallel>], iteration_bounds = array<i64: 2, 1, 2>, scalar_prefetch = 0 : i64, scratch_operands = 0 : i64, tpu.core_type = #tpu.core_type<tc>, window_params = [{transform_indices = @transform_0, window_bounds = array<i64: 1, 256, 384>}, {transform_indices = @transform_1, window_bounds = array<i64: 1, 384, 256>}]} {
    %c0 = arith.constant 0 : index
    %c0_0 = arith.constant 0 : index
    %c0_1 = arith.constant 0 : index
    %0 = vector.load %arg3[%c0, %c0_0, %c0_1] : memref<1x256x384xbf16, #tpu.memory_space<vmem>>, vector<1x256x384xbf16>
    %1 = tpu.transpose %0, [0, 2, 1] : vector<1x256x384xbf16> -> vector<1x384x256xbf16>
    %c0_2 = arith.constant 0 : index
    %c0_3 = arith.constant 0 : index
    %c0_4 = arith.constant 0 : index
    %2 = vector.load %arg4[%c0_2, %c0_3, %c0_4] : memref<1x384x256xbf16, #tpu.memory_space<vmem>>, vector<1x384x256xbf16>
    tpu.vector_store %arg4[%c0_2, %c0_3, %c0_4], %1 {strides = array<i32>} : memref<1x384x256xbf16, #tpu.memory_space<vmem>>, vector<1x384x256xbf16>,
    return
  }
  func.func @transform_0(%arg0: i32, %arg1: i32, %arg2: i32) -> (i32, i32, i32) {
    %c0_i32 = arith.constant 0 : i32
    return %arg0, %arg1, %arg2 : i32, i32, i32
  }
  func.func @transform_1(%arg0: i32, %arg1: i32, %arg2: i32) -> (i32, i32, i32) {
    %c0_i32 = arith.constant 0 : i32
    return %arg0, %arg2, %arg1 : i32, i32, i32
  }
}

</mosaic_0001>

<llo_original>
// kernel: tpu_custom_call.1
$region0: #{tpu_custom_call.1}
  #allocation0 [shape = 'u32[]', space=smem, size = 0x4, offset = 0x4, fixed_abs, tag = 'smem constant byte address 0x4 - core index']
  #allocation1 [shape = 'u32[144,128]{1,0:T(1,128)}', space=vmem, size = 0x12000, scoped, tag = 'internal scratch']
  %s0 = inlined_call_operand.hbm [shape: bf16[2,256,640], index: 0, kind: input, shape index: {}]
  %s1 = inlined_call_operand.hbm [shape: bf16[2,640,256], index: 1, kind: output, shape index: {}]
  %s2 = sld [smem:[#allocation0]]
  $region41: #{tpu_custom_call.1} parent=0
    _
  %s4 = ssub.s32 1, %s2
  %s5 = scalar_select 0, %s4, %s2
  $region1: #{tpu_custom_call.1} parent=0
    #allocation2 [shape = 'u8[393216]{0}', space=vmem, size = 0x60000, scoped, tag = 'input window, operand 0']
    #allocation3 [shape = 's32[2]{0}', space=sflag, size = 0x8, scoped, tag = 'scoped memory for tpu_custom_call.1']
    #allocation4 [shape = 's32[2]{0}', space=sflag, size = 0x8, scoped, tag = 'scoped memory for tpu_custom_call.1']
    #allocation5 [shape = 'u8[393216]{0}', space=vmem, size = 0x60000, scoped, tag = 'output window, operand 0']
    %6 = vsyncpa [#allocation3], 0
    %s7 = scalar_lea.sflag [#allocation3], 1
    %8 = vsyncpa %s7, 0
    %9 = vsyncpa [#allocation4], 0
    %s10 = scalar_lea.sflag [#allocation4], 1
    %11 = vsyncpa %s10, 0
    loop: start=0, step=1, limit=6
    $region2: #{tpu_custom_call.1} parent=1 // loop_pre_header
      _
    $region3: #{tpu_custom_call.1} parent=1 // loop_header
      %s13 = sphi 0, %s17
      %p14 = scmp.ge.s32.totalorder %s13, 6
      %s20 = sphi 0, %s39
      %s21 = sphi 0, %s35
      %s22 = sphi 0, %s31
      %s23 = sphi 0, %s20
      %s24 = sphi 0, %s21
      %s25 = sphi 0, %s22
      %s26 = sphi 0, %s23
      %s27 = sphi 0, %s24
      %s28 = sphi 0, %s25
      %s46 = sphi 0, %s48
      %s49 = sphi 0, %s46
      %s50 = sphi 0, %s49
      %s66 = sphi 0, %s50
      %s76 = sphi 0, %s78
      %s79 = sphi 0, %s76
      %s80 = sphi 0, %s79
      %s96 = sphi 0, %s80
    $region4: #{tpu_custom_call.1} parent=1 // loop_header_branch
      %16 = sbr.rel (%p14) target = $region8
    $region5: #{tpu_custom_call.1} parent=1 // loop_body
      %s18 = ssub.s32 %s13, 1
      %s19 = ssub.s32 %s13, 2
      %s29 = sadd.s32 1, %s22
      %p30 = scmp.ge.s32.totalorder %s29, 2
      %s31 = scalar_select %p30, 0, %s29
      %s32 = sadd.s32 1, %s21
      %s33 = scalar_select %p30, %s32, %s21
      %p34 = scmp.ge.s32.totalorder %s33, 1
      %s35 = scalar_select %p34, 0, %s33
      %s36 = sadd.s32 1, %s20
      %s37 = scalar_select %p34, %s36, %s20
      %p38 = scmp.ge.s32.totalorder %s37, 2
      %s39 = scalar_select %p38, 0, %s37
      %s40 = ssub.s32 %s20, %s39
      %s41 = ssub.s32 %s21, %s35
      %s42 = sor.u32 %s40, %s41
      %s43 = ssub.s32 %s22, %s31
      %s44 = sor.u32 %s42, %s43
      %p45 = scmp.eq.s32.totalorder %s44, 0
      %s47 = sadd.s32 %s46, 1
      %s48 = scalar_select %p45, %s46, %s47
      %p51 = pneg %p45
      %p52 = scmp.eq.s32.totalorder %s13, 3
      %p53 = por %p51, %p52
      %p54 = scmp.ne.s32.totalorder %s46, %s49
      %p55 = scmp.eq.s32.totalorder %s13, 0
      %p56 = por %p54, %p55
      %p57 = scmp.ne.s32.totalorder %s46, %s49
      %p58 = scmp.eq.s32.totalorder %s18, 3
      %p59 = por %p57, %p58
      %p60 = scmp.ne.s32.totalorder %s49, %s50
      %p61 = scmp.eq.s32.totalorder %s18, 0
      %p62 = por %p60, %p61
      %p63 = scmp.ne.s32.totalorder %s49, %s50
      %p64 = scmp.eq.s32.totalorder %s19, 3
      %p65 = por %p63, %p64
      %p67 = scmp.ne.s32.totalorder %s50, %s66
      %p68 = scmp.eq.s32.totalorder %s19, 0
      %p69 = por %p67, %p68
      %s70 = ssub.s32 %s20, %s39
      %s71 = ssub.s32 %s22, %s31
      %s72 = sor.u32 %s70, %s71
      %s73 = ssub.s32 %s21, %s35
      %s74 = sor.u32 %s72, %s73
      %p75 = scmp.eq.s32.totalorder %s74, 0
      %s77 = sadd.s32 %s76, 1
      %s78 = scalar_select %p75, %s76, %s77
      %p81 = pneg %p75
      %p82 = scmp.eq.s32.totalorder %s13, 3
      %p83 = por %p81, %p82
      %p84 = scmp.ne.s32.totalorder %s76, %s79
      %p85 = scmp.eq.s32.totalorder %s13, 0
      %p86 = por %p84, %p85
      %p87 = scmp.ne.s32.totalorder %s76, %s79
      %p88 = scmp.eq.s32.totalorder %s18, 3
      %p89 = por %p87, %p88
      %p90 = scmp.ne.s32.totalorder %s79, %s80
      %p91 = scmp.eq.s32.totalorder %s18, 0
      %p92 = por %p90, %p91
      %p93 = scmp.ne.s32.totalorder %s79, %s80
      %p94 = scmp.eq.s32.totalorder %s19, 3
      %p95 = por %p93, %p94
      %p97 = scmp.ne.s32.totalorder %s80, %s96
      %p98 = scmp.eq.s32.totalorder %s19, 0
      %p99 = por %p97, %p98
      %p100 = scmp.le.s32.totalorder 1, %s13
      %p101 = scmp.lt.s32.totalorder %s13, 5
      %p102 = pnand %p100, %p101
      %p103 = pneg %p102
      // Predicated region
      $region9: #{tpu_custom_call.1} parent=5 // pred_check
        _
      $region10: #{tpu_custom_call.1} parent=5 // pred_check_branch
        %105 = sbr.rel (%p102) target = $region12
      $region11: #{tpu_custom_call.1} parent=5 // pred_region
        %s106 = ssub.s32 %s13, 1
      $region12: #{tpu_custom_call.1} parent=5 // pred_fallthru
        _
      %p107 = scmp.lt.s32.totalorder %s13, 4
      // Predicated region
      $region13: #{tpu_custom_call.1} parent=5 // pred_check
        %p108 = pneg %p107
      $region14: #{tpu_custom_call.1} parent=5 // pred_check_branch
        %110 = sbr.rel (%p108) target = $region16
      $region15: #{tpu_custom_call.1} parent=5 // pred_region
        // Predicated region
        $region17: #{tpu_custom_call.1} parent=15 // pred_check
          %p111 = pneg %p56
        $region18: #{tpu_custom_call.1} parent=15 // pred_check_branch
          %113 = sbr.rel (%p111) target = $region20
        $region19: #{tpu_custom_call.1} parent=15 // pred_region
          %s114 = sand.u32 %s46, 1
          %s115 = scalar_lea.sflag [#allocation3], %s114
          %s116 = sand.u32 %s46, 1
          %s117 = smul.addr %s116, 384
          %s118 = scalar_lea.vmem [#allocation2], %s117
          %s119 = smul.u32 32, %s21
          %s120 = smul.u32 3, %s22
          %s121 = ssub.s32 5, %s120
          %p122 = scmp.lt.s32.totalorder %s121, 3
          %s123 = scalar_select %p122, %s121, 3
          %s124 = smul.u32 2048, %s123
          %s126 = ssub.s32 6144, %s124
          %127 = vsyncadd %s115, %s126
          %p128 = scmp.ne.s32.totalorder 0, %s124
          %s129 = smul.addr %s119, 5
          %s130 = sadd.s32 %s120, %s129
          %s131 = smul.addr %s20, 160
          %s132 = sadd.s32 %s130, %s131
          %s133 = smul.addr %s132, 64
          %s134 = scalar_lea.hbm %s0, %s133
          %s135 = smul.u32 %s123, 4
          %s136 = smul.u32 %s135, 32
          %s137 = sshll.u32 %s118, 4
          %s138 = int_to_ptr.vmem [resolvable:$true] %s137
          %s139 = sshll.u32 %s136, 4
          %143 = dma.hbm_to_vmem [thread:$0]  (%p128), %s134, %s139, %s138, %s115, 320, 192, %s135
        $region20: #{tpu_custom_call.1} parent=15 // pred_fallthru
          _
      $region16: #{tpu_custom_call.1} parent=5 // pred_fallthru
        _
      %p144 = scmp.le.s32.totalorder 1, %s13
      %p145 = scmp.lt.s32.totalorder %s13, 5
      %p146 = pnand %p144, %p145
      %p147 = pneg %p146
      // Predicated region
      $region21: #{tpu_custom_call.1} parent=5 // pred_check
        _
      $region22: #{tpu_custom_call.1} parent=5 // pred_check_branch
        %149 = sbr.rel (%p146) target = $region24
      $region23: #{tpu_custom_call.1} parent=5 // pred_region
        %s150 = ssub.s32 %s13, 1
        %s151 = sand.u32 %s49, 1
        %s152 = scalar_lea.sflag [#allocation3], %s151
        %s153 = sand.u32 %s49, 1
        %s154 = smul.addr %s153, 384
        %s155 = scalar_lea.vmem [#allocation2], %s154
        // Predicated region
        $region25: #{tpu_custom_call.1} parent=23 // pred_check
          %p156 = pneg %p62
        $region26: #{tpu_custom_call.1} parent=23 // pred_check_branch
          %158 = sbr.rel (%p156) target = $region28
        $region27: #{tpu_custom_call.1} parent=23 // pred_region
          %159 = dma.done %s152, 6144
        $region28: #{tpu_custom_call.1} parent=23 // pred_fallthru
          _
        %s160 = sand.u32 %s49, 1
        %s161 = scalar_lea.sflag [#allocation3], %s160
        %s162 = sand.u32 %s49, 1
        %s163 = smul.addr %s162, 384
        %s164 = scalar_lea.vmem [#allocation2], %s163
        %p165 = pneg %p62
        %p166 = pneg %p59
        %p167 = pneg %p92
        %p168 = pneg %p89
        %s169 = sand.u32 %s79, 1
        %s170 = scalar_lea.sflag [#allocation4], %s169
        %s171 = sand.u32 %s79, 1
        %s172 = smul.addr %s171, 384
        %s173 = scalar_lea.vmem [#allocation5], %s172
        %s174 = smul.u32 32, %s24
        %s175 = smul.u32 3, %s25
        %s176 = ssub.s32 5, %s175
        %p177 = scmp.lt.s32.totalorder %s176, 3
        %s178 = scalar_select %p177, %s176, 3
        %s179 = smul.u32 2048, %s178
        %s180 = smul.u32 48, %s25
        %s181 = smul.u32 2, %s24
        %s182 = ssub.s32 80, %s180
        %p183 = scmp.lt.s32.totalorder %s182, 48
        %s184 = scalar_select %p183, %s182, 48
        %s185 = smul.u32 64, %s184
        %s186 = smul.u32 %s185, 2
        %v187 = vld [vmem:[%s155] sm:$0xff]
        %v188 = vld [vmem:[%s155 + $0x8] sm:$0xf]
        %v189 = vld [vmem:[%s155 + $0xc] sm:$0xff]
        %v190 = vld [vmem:[%s155 + $0x14] sm:$0xf]
        %v191 = vld [vmem:[%s155 + $0x18] sm:$0xff]
        %v192 = vld [vmem:[%s155 + $0x20] sm:$0xf]
        %v193 = vld [vmem:[%s155 + $0x24] sm:$0xff]
        %v194 = vld [vmem:[%s155 + $0x2c] sm:$0xf]
        %v195 = vld [vmem:[%s155 + $0x30] sm:$0xff]
        %v196 = vld [vmem:[%s155 + $0x38] sm:$0xf]
        %v197 = vld [vmem:[%s155 + $0x3c] sm:$0xff]
        %v198 = vld [vmem:[%s155 + $0x44] sm:$0xf]
        %v199 = vld [vmem:[%s155 + $0x48] sm:$0xff]
        %v200 = vld [vmem:[%s155 + $0x50] sm:$0xf]
        %v201 = vld [vmem:[%s155 + $0x54] sm:$0xff]
        %v202 = vld [vmem:[%s155 + $0x5c] sm:$0xf]
        %v203 = vld [vmem:[%s155 + $0x60] sm:$0xff]
        %v204 = vld [vmem:[%s155 + $0x68] sm:$0xf]
        %v205 = vld [vmem:[%s155 + $0x6c] sm:$0xff]
        %v206 = vld [vmem:[%s155 + $0x74] sm:$0xf]
        %v207 = vld [vmem:[%s155 + $0x78] sm:$0xff]
        %v208 = vld [vmem:[%s155 + $0x80] sm:$0xf]
        %v209 = vld [vmem:[%s155 + $0x84] sm:$0xff]
        %v210 = vld [vmem:[%s155 + $0x8c] sm:$0xf]
        %v211 = vld [vmem:[%s155 + $0x90] sm:$0xff]
        %v212 = vld [vmem:[%s155 + $0x98] sm:$0xf]
        %v213 = vld [vmem:[%s155 + $0x9c] sm:$0xff]
        %v214 = vld [vmem:[%s155 + $0xa4] sm:$0xf]
        %v215 = vld [vmem:[%s155 + $0xa8] sm:$0xff]
        %v216 = vld [vmem:[%s155 + $0xb0] sm:$0xf]
        %v217 = vld [vmem:[%s155 + $0xb4] sm:$0xff]
        %v218 = vld [vmem:[%s155 + $0xbc] sm:$0xf]
        %v219 = vld [vmem:[%s155 + $0xc0] sm:$0xff]
        %v220 = vld [vmem:[%s155 + $0xc8] sm:$0xf]
        %v221 = vld [vmem:[%s155 + $0xcc] sm:$0xff]
        %v222 = vld [vmem:[%s155 + $0xd4] sm:$0xf]
        %v223 = vld [vmem:[%s155 + $0xd8] sm:$0xff]
        %v224 = vld [vmem:[%s155 + $0xe0] sm:$0xf]
        %v225 = vld [vmem:[%s155 + $0xe4] sm:$0xff]
        %v226 = vld [vmem:[%s155 + $0xec] sm:$0xf]
        %v227 = vld [vmem:[%s155 + $0xf0] sm:$0xff]
        %v228 = vld [vmem:[%s155 + $0xf8] sm:$0xf]
        %v229 = vld [vmem:[%s155 + $0xfc] sm:$0xff]
        %v230 = vld [vmem:[%s155 + $0x104] sm:$0xf]
        %v231 = vld [vmem:[%s155 + $0x108] sm:$0xff]
        %v232 = vld [vmem:[%s155 + $0x110] sm:$0xf]
        %v233 = vld [vmem:[%s155 + $0x114] sm:$0xff]
        %v234 = vld [vmem:[%s155 + $0x11c] sm:$0xf]
        %v235 = vld [vmem:[%s155 + $0x120] sm:$0xff]
        %v236 = vld [vmem:[%s155 + $0x128] sm:$0xf]
        %v237 = vld [vmem:[%s155 + $0x12c] sm:$0xff]
        %v238 = vld [vmem:[%s155 + $0x134] sm:$0xf]
        %v239 = vld [vmem:[%s155 + $0x138] sm:$0xff]
        %v240 = vld [vmem:[%s155 + $0x140] sm:$0xf]
        %v241 = vld [vmem:[%s155 + $0x144] sm:$0xff]
        %v242 = vld [vmem:[%s155 + $0x14c] sm:$0xf]
        %v243 = vld [vmem:[%s155 + $0x150] sm:$0xff]
        %v244 = vld [vmem:[%s155 + $0x158] sm:$0xf]
        %v245 = vld [vmem:[%s155 + $0x15c] sm:$0xff]
        %v246 = vld [vmem:[%s155 + $0x164] sm:$0xf]
        %v247 = vld [vmem:[%s155 + $0x168] sm:$0xff]
        %v248 = vld [vmem:[%s155 + $0x170] sm:$0xf]
        %v249 = vld [vmem:[%s155 + $0x174] sm:$0xff]
        %v250 = vld [vmem:[%s155 + $0x17c] sm:$0xf]
        %v315 = vunpack.c.l.b16 %v187
        %v316 = vunpack.c.h.b16 %v187
        %v317 = vunpack.c.l.b16 %v188
        %v318 = vunpack.c.l.b16 %v189
        %v319 = vunpack.c.h.b16 %v189
        %v320 = vunpack.c.l.b16 %v190
        %v321 = vunpack.c.l.b16 %v191
        %v322 = vunpack.c.h.b16 %v191
        %v323 = vunpack.c.l.b16 %v192
        %v324 = vunpack.c.l.b16 %v193
        %v325 = vunpack.c.h.b16 %v193
        %v326 = vunpack.c.l.b16 %v194
        %v327 = vunpack.c.l.b16 %v195
        %v328 = vunpack.c.h.b16 %v195
        %v329 = vunpack.c.l.b16 %v196
        %v330 = vunpack.c.l.b16 %v197
        %v331 = vunpack.c.h.b16 %v197
        %v332 = vunpack.c.l.b16 %v198
        %v333 = vunpack.c.l.b16 %v199
        %v334 = vunpack.c.h.b16 %v199
        %v335 = vunpack.c.l.b16 %v200
        %v336 = vunpack.c.l.b16 %v201
        %v337 = vunpack.c.h.b16 %v201
        %v338 = vunpack.c.l.b16 %v202
        %v339 = vunpack.c.l.b16 %v203
        %v340 = vunpack.c.h.b16 %v203
        %v341 = vunpack.c.l.b16 %v204
        %v342 = vunpack.c.l.b16 %v205
        %v343 = vunpack.c.h.b16 %v205
        %v344 = vunpack.c.l.b16 %v206
        %v345 = vunpack.c.l.b16 %v207
        %v346 = vunpack.c.h.b16 %v207
        %v347 = vunpack.c.l.b16 %v208
        %v348 = vunpack.c.l.b16 %v209
        %v349 = vunpack.c.h.b16 %v209
        %v350 = vunpack.c.l.b16 %v210
        %v351 = vunpack.c.l.b16 %v211
        %v352 = vunpack.c.h.b16 %v211
        %v353 = vunpack.c.l.b16 %v212
        %v354 = vunpack.c.l.b16 %v213
        %v355 = vunpack.c.h.b16 %v213
        %v356 = vunpack.c.l.b16 %v214
        %v357 = vunpack.c.l.b16 %v215
        %v358 = vunpack.c.h.b16 %v215
        %v359 = vunpack.c.l.b16 %v216
        %v360 = vunpack.c.l.b16 %v217
        %v361 = vunpack.c.h.b16 %v217
        %v362 = vunpack.c.l.b16 %v218
        %v363 = vunpack.c.l.b16 %v219
        %v364 = vunpack.c.h.b16 %v219
        %v365 = vunpack.c.l.b16 %v220
        %v366 = vunpack.c.l.b16 %v221
        %v367 = vunpack.c.h.b16 %v221
        %v368 = vunpack.c.l.b16 %v222
        %v369 = vunpack.c.l.b16 %v223
        %v370 = vunpack.c.h.b16 %v223
        %v371 = vunpack.c.l.b16 %v224
        %v372 = vunpack.c.l.b16 %v225
        %v373 = vunpack.c.h.b16 %v225
        %v374 = vunpack.c.l.b16 %v226
        %v375 = vunpack.c.l.b16 %v227
        %v376 = vunpack.c.h.b16 %v227
        %v377 = vunpack.c.l.b16 %v228
        %v378 = vunpack.c.l.b16 %v229
        %v379 = vunpack.c.h.b16 %v229
        %v380 = vunpack.c.l.b16 %v230
        %v381 = vunpack.c.l.b16 %v231
        %v382 = vunpack.c.h.b16 %v231
        %v383 = vunpack.c.l.b16 %v232
        %v384 = vunpack.c.l.b16 %v233
        %v385 = vunpack.c.h.b16 %v233
        %v386 = vunpack.c.l.b16 %v234
        %v387 = vunpack.c.l.b16 %v235
        %v388 = vunpack.c.h.b16 %v235
        %v389 = vunpack.c.l.b16 %v236
        %v390 = vunpack.c.l.b16 %v237
        %v391 = vunpack.c.h.b16 %v237
        %v392 = vunpack.c.l.b16 %v238
        %v393 = vunpack.c.l.b16 %v239
        %v394 = vunpack.c.h.b16 %v239
        %v395 = vunpack.c.l.b16 %v240
        %v396 = vunpack.c.l.b16 %v241
        %v397 = vunpack.c.h.b16 %v241
        %v398 = vunpack.c.l.b16 %v242
        %v399 = vunpack.c.l.b16 %v243
        %v400 = vunpack.c.h.b16 %v243
        %v401 = vunpack.c.l.b16 %v244
        %v402 = vunpack.c.l.b16 %v245
        %v403 = vunpack.c.h.b16 %v245
        %v404 = vunpack.c.l.b16 %v246
        %v405 = vunpack.c.l.b16 %v247
        %v406 = vunpack.c.h.b16 %v247
        %v407 = vunpack.c.l.b16 %v248
        %v408 = vunpack.c.l.b16 %v249
        %v409 = vunpack.c.h.b16 %v249
        %v410 = vunpack.c.l.b16 %v250
        %v411 = vpack.c.b16 %v318, %v315
        %v412 = vpack.c.b16 %v319, %v316
        %v413 = vpack.c.b16 %v320, %v317
        %v414 = vpack.c.b16 %v324, %v321
        %v415 = vpack.c.b16 %v325, %v322
        %v416 = vpack.c.b16 %v326, %v323
        %v417 = vpack.c.b16 %v330, %v327
        %v418 = vpack.c.b16 %v331, %v328
        %v419 = vpack.c.b16 %v332, %v329
        %v420 = vpack.c.b16 %v336, %v333
        %v421 = vpack.c.b16 %v337, %v334
        %v422 = vpack.c.b16 %v338, %v335
        %v423 = vpack.c.b16 %v342, %v339
        %v424 = vpack.c.b16 %v343, %v340
        %v425 = vpack.c.b16 %v344, %v341
        %v426 = vpack.c.b16 %v348, %v345
        %v427 = vpack.c.b16 %v349, %v346
        %v428 = vpack.c.b16 %v350, %v347
        %v429 = vpack.c.b16 %v354, %v351
        %v430 = vpack.c.b16 %v355, %v352
        %v431 = vpack.c.b16 %v356, %v353
        %v432 = vpack.c.b16 %v360, %v357
        %v433 = vpack.c.b16 %v361, %v358
        %v434 = vpack.c.b16 %v362, %v359
        %v435 = vpack.c.b16 %v366, %v363
        %v436 = vpack.c.b16 %v367, %v364
        %v437 = vpack.c.b16 %v368, %v365
        %v438 = vpack.c.b16 %v372, %v369
        %v439 = vpack.c.b16 %v373, %v370
        %v440 = vpack.c.b16 %v374, %v371
        %v441 = vpack.c.b16 %v378, %v375
        %v442 = vpack.c.b16 %v379, %v376
        %v443 = vpack.c.b16 %v380, %v377
        %v444 = vpack.c.b16 %v384, %v381
        %v445 = vpack.c.b16 %v385, %v382
        %v446 = vpack.c.b16 %v386, %v383
        %v447 = vpack.c.b16 %v390, %v387
        %v448 = vpack.c.b16 %v391, %v388
        %v449 = vpack.c.b16 %v392, %v389
        %v450 = vpack.c.b16 %v396, %v393
        %v451 = vpack.c.b16 %v397, %v394
        %v452 = vpack.c.b16 %v398, %v395
        %v453 = vpack.c.b16 %v402, %v399
        %v454 = vpack.c.b16 %v403, %v400
        %v455 = vpack.c.b16 %v404, %v401
        %v456 = vpack.c.b16 %v408, %v405
        %v457 = vpack.c.b16 %v409, %v406
        %v458 = vpack.c.b16 %v410, %v407
        %507 = vxpose.xlu0.c.b16.start [1/8] %v411, 128
        %508 = vxpose.xlu0.c.b16.cont [2/8] %v414, 128
        %509 = vxpose.xlu0.c.b16.cont [3/8] %v417, 128
        %510 = vxpose.xlu0.c.b16.cont [4/8] %v420, 128
        %511 = vxpose.xlu0.c.b16.cont [5/8] %v423, 128
        %512 = vxpose.xlu0.c.b16.cont [6/8] %v426, 128
        %513 = vxpose.xlu0.c.b16.cont [7/8] %v429, 128
        %514 = vxpose.xlu0.c.b16.end [8/8] %v432, 128
        %v515 = vpop.trf.xlu0
        %v516 = vpop.trf.xlu0
        %v517 = vpop.trf.xlu0
        %v518 = vpop.trf.xlu0
        %v519 = vpop.trf.xlu0
        %v520 = vpop.trf.xlu0
        %v521 = vpop.trf.xlu0
        %v522 = vpop.trf.xlu0
        %523 = vxpose.xlu0.c.b16.start [1/8] %v412, 128
        %524 = vxpose.xlu0.c.b16.cont [2/8] %v415, 128
        %525 = vxpose.xlu0.c.b16.cont [3/8] %v418, 128
        %526 = vxpose.xlu0.c.b16.cont [4/8] %v421, 128
        %527 = vxpose.xlu0.c.b16.cont [5/8] %v424, 128
        %528 = vxpose.xlu0.c.b16.cont [6/8] %v427, 128
        %529 = vxpose.xlu0.c.b16.cont [7/8] %v430, 128
        %530 = vxpose.xlu0.c.b16.end [8/8] %v433, 128
        %v531 = vpop.trf.xlu0
        %v532 = vpop.trf.xlu0
        %v533 = vpop.trf.xlu0
        %v534 = vpop.trf.xlu0
        %v535 = vpop.trf.xlu0
        %v536 = vpop.trf.xlu0
        %v537 = vpop.trf.xlu0
        %v538 = vpop.trf.xlu0
        %539 = vxpose.xlu0.c.b16.start [1/8] %v413, 128
        %540 = vxpose.xlu0.c.b16.cont [2/8] %v416, 128
        %541 = vxpose.xlu0.c.b16.cont [3/8] %v419, 128
        %542 = vxpose.xlu0.c.b16.cont [4/8] %v422, 128
        %543 = vxpose.xlu0.c.b16.cont [5/8] %v425, 128
        %544 = vxpose.xlu0.c.b16.cont [6/8] %v428, 128
        %545 = vxpose.xlu0.c.b16.cont [7/8] %v431, 128
        %546 = vxpose.xlu0.c.b16.end [8/8] %v434, 128
        %v547 = vpop.trf.xlu0
        %v548 = vpop.trf.xlu0
        %v549 = vpop.trf.xlu0
        %v550 = vpop.trf.xlu0
        %v551 = vpop.trf.xlu0
        %v552 = vpop.trf.xlu0
        %v553 = vpop.trf.xlu0
        %v554 = vpop.trf.xlu0
        %555 = vxpose.xlu0.c.b16.start [1/8] %v435, 128
        %556 = vxpose.xlu0.c.b16.cont [2/8] %v438, 128
        %557 = vxpose.xlu0.c.b16.cont [3/8] %v441, 128
        %558 = vxpose.xlu0.c.b16.cont [4/8] %v444, 128
        %559 = vxpose.xlu0.c.b16.cont [5/8] %v447, 128
        %560 = vxpose.xlu0.c.b16.cont [6/8] %v450, 128
        %561 = vxpose.xlu0.c.b16.cont [7/8] %v453, 128
        %562 = vxpose.xlu0.c.b16.end [8/8] %v456, 128
        %v563 = vpop.trf.xlu0
        %v564 = vpop.trf.xlu0
        %v565 = vpop.trf.xlu0
        %v566 = vpop.trf.xlu0
        %v567 = vpop.trf.xlu0
        %v568 = vpop.trf.xlu0
        %v569 = vpop.trf.xlu0
        %v570 = vpop.trf.xlu0
        %571 = vxpose.xlu0.c.b16.start [1/8] %v436, 128
        %572 = vxpose.xlu0.c.b16.cont [2/8] %v439, 128
        %573 = vxpose.xlu0.c.b16.cont [3/8] %v442, 128
        %574 = vxpose.xlu0.c.b16.cont [4/8] %v445, 128
        %575 = vxpose.xlu0.c.b16.cont [5/8] %v448, 128
        %576 = vxpose.xlu0.c.b16.cont [6/8] %v451, 128
        %577 = vxpose.xlu0.c.b16.cont [7/8] %v454, 128
        %578 = vxpose.xlu0.c.b16.end [8/8] %v457, 128
        %v579 = vpop.trf.xlu0
        %v580 = vpop.trf.xlu0
        %v581 = vpop.trf.xlu0
        %v582 = vpop.trf.xlu0
        %v583 = vpop.trf.xlu0
        %v584 = vpop.trf.xlu0
        %v585 = vpop.trf.xlu0
        %v586 = vpop.trf.xlu0
        %587 = vxpose.xlu0.c.b16.start [1/8] %v437, 128
        %588 = vxpose.xlu0.c.b16.cont [2/8] %v440, 128
        %589 = vxpose.xlu0.c.b16.cont [3/8] %v443, 128
        %590 = vxpose.xlu0.c.b16.cont [4/8] %v446, 128
        %591 = vxpose.xlu0.c.b16.cont [5/8] %v449, 128
        %592 = vxpose.xlu0.c.b16.cont [6/8] %v452, 128
        %593 = vxpose.xlu0.c.b16.cont [7/8] %v455, 128
        %594 = vxpose.xlu0.c.b16.end [8/8] %v458, 128
        %v595 = vpop.trf.xlu0
        %v596 = vpop.trf.xlu0
        %v597 = vpop.trf.xlu0
        %v598 = vpop.trf.xlu0
        %v599 = vpop.trf.xlu0
        %v600 = vpop.trf.xlu0
        %v601 = vpop.trf.xlu0
        %v602 = vpop.trf.xlu0
        %v651 = vunpack.c.l.b16 %v515
        %v652 = vunpack.c.l.b16 %v563
        %v653 = vunpack.c.h.b16 %v515
        %v654 = vunpack.c.h.b16 %v563
        %v655 = vunpack.c.l.b16 %v516
        %v656 = vunpack.c.l.b16 %v564
        %v657 = vunpack.c.h.b16 %v516
        %v658 = vunpack.c.h.b16 %v564
        %v659 = vunpack.c.l.b16 %v517
        %v660 = vunpack.c.l.b16 %v565
        %v661 = vunpack.c.h.b16 %v517
        %v662 = vunpack.c.h.b16 %v565
        %v663 = vunpack.c.l.b16 %v518
        %v664 = vunpack.c.l.b16 %v566
        %v665 = vunpack.c.h.b16 %v518
        %v666 = vunpack.c.h.b16 %v566
        %v667 = vunpack.c.l.b16 %v519
        %v668 = vunpack.c.l.b16 %v567
        %v669 = vunpack.c.h.b16 %v519
        %v670 = vunpack.c.h.b16 %v567
        %v671 = vunpack.c.l.b16 %v520
        %v672 = vunpack.c.l.b16 %v568
        %v673 = vunpack.c.h.b16 %v520
        %v674 = vunpack.c.h.b16 %v568
        %v675 = vunpack.c.l.b16 %v521
        %v676 = vunpack.c.l.b16 %v569
        %v677 = vunpack.c.h.b16 %v521
        %v678 = vunpack.c.h.b16 %v569
        %v679 = vunpack.c.l.b16 %v522
        %v680 = vunpack.c.l.b16 %v570
        %v681 = vunpack.c.h.b16 %v522
        %v682 = vunpack.c.h.b16 %v570
        %v683 = vunpack.c.l.b16 %v531
        %v684 = vunpack.c.l.b16 %v579
        %v685 = vunpack.c.h.b16 %v531
        %v686 = vunpack.c.h.b16 %v579
        %v687 = vunpack.c.l.b16 %v532
        %v688 = vunpack.c.l.b16 %v580
        %v689 = vunpack.c.h.b16 %v532
        %v690 = vunpack.c.h.b16 %v580
        %v691 = vunpack.c.l.b16 %v533
        %v692 = vunpack.c.l.b16 %v581
        %v693 = vunpack.c.h.b16 %v533
        %v694 = vunpack.c.h.b16 %v581
        %v695 = vunpack.c.l.b16 %v534
        %v696 = vunpack.c.l.b16 %v582
        %v697 = vunpack.c.h.b16 %v534
        %v698 = vunpack.c.h.b16 %v582
        %v699 = vunpack.c.l.b16 %v535
        %v700 = vunpack.c.l.b16 %v583
        %v701 = vunpack.c.h.b16 %v535
        %v702 = vunpack.c.h.b16 %v583
        %v703 = vunpack.c.l.b16 %v536
        %v704 = vunpack.c.l.b16 %v584
        %v705 = vunpack.c.h.b16 %v536
        %v706 = vunpack.c.h.b16 %v584
        %v707 = vunpack.c.l.b16 %v537
        %v708 = vunpack.c.l.b16 %v585
        %v709 = vunpack.c.h.b16 %v537
        %v710 = vunpack.c.h.b16 %v585
        %v711 = vunpack.c.l.b16 %v538
        %v712 = vunpack.c.l.b16 %v586
        %v713 = vunpack.c.h.b16 %v538
        %v714 = vunpack.c.h.b16 %v586
        %v715 = vunpack.c.l.b16 %v547
        %v716 = vunpack.c.l.b16 %v595
        %v717 = vunpack.c.h.b16 %v547
        %v718 = vunpack.c.h.b16 %v595
        %v719 = vunpack.c.l.b16 %v548
        %v720 = vunpack.c.l.b16 %v596
        %v721 = vunpack.c.h.b16 %v548
        %v722 = vunpack.c.h.b16 %v596
        %v723 = vunpack.c.l.b16 %v549
        %v724 = vunpack.c.l.b16 %v597
        %v725 = vunpack.c.h.b16 %v549
        %v726 = vunpack.c.h.b16 %v597
        %v727 = vunpack.c.l.b16 %v550
        %v728 = vunpack.c.l.b16 %v598
        %v729 = vunpack.c.h.b16 %v550
        %v730 = vunpack.c.h.b16 %v598
        %v731 = vunpack.c.l.b16 %v551
        %v732 = vunpack.c.l.b16 %v599
        %v733 = vunpack.c.h.b16 %v551
        %v734 = vunpack.c.h.b16 %v599
        %v735 = vunpack.c.l.b16 %v552
        %v736 = vunpack.c.l.b16 %v600
        %v737 = vunpack.c.h.b16 %v552
        %v738 = vunpack.c.h.b16 %v600
        %v739 = vunpack.c.l.b16 %v553
        %v740 = vunpack.c.l.b16 %v601
        %v741 = vunpack.c.h.b16 %v553
        %v742 = vunpack.c.h.b16 %v601
        %v743 = vunpack.c.l.b16 %v554
        %v744 = vunpack.c.l.b16 %v602
        %v745 = vunpack.c.h.b16 %v554
        %v746 = vunpack.c.h.b16 %v602
        %v747 = vpack.c.b16 %v652, %v651
        %v748 = vpack.c.b16 %v654, %v653
        %v749 = vpack.c.b16 %v656, %v655
        %v750 = vpack.c.b16 %v658, %v657
        %v751 = vpack.c.b16 %v660, %v659
        %v752 = vpack.c.b16 %v662, %v661
        %v753 = vpack.c.b16 %v664, %v663
        %v754 = vpack.c.b16 %v666, %v665
        %v755 = vpack.c.b16 %v668, %v667
        %v756 = vpack.c.b16 %v670, %v669
        %v757 = vpack.c.b16 %v672, %v671
        %v758 = vpack.c.b16 %v674, %v673
        %v759 = vpack.c.b16 %v676, %v675
        %v760 = vpack.c.b16 %v678, %v677
        %v761 = vpack.c.b16 %v680, %v679
        %v762 = vpack.c.b16 %v682, %v681
        %v763 = vpack.c.b16 %v684, %v683
        %v764 = vpack.c.b16 %v686, %v685
        %v765 = vpack.c.b16 %v688, %v687
        %v766 = vpack.c.b16 %v690, %v689
        %v767 = vpack.c.b16 %v692, %v691
        %v768 = vpack.c.b16 %v694, %v693
        %v769 = vpack.c.b16 %v696, %v695
        %v770 = vpack.c.b16 %v698, %v697
        %v771 = vpack.c.b16 %v700, %v699
        %v772 = vpack.c.b16 %v702, %v701
        %v773 = vpack.c.b16 %v704, %v703
        %v774 = vpack.c.b16 %v706, %v705
        %v775 = vpack.c.b16 %v708, %v707
        %v776 = vpack.c.b16 %v710, %v709
        %v777 = vpack.c.b16 %v712, %v711
        %v778 = vpack.c.b16 %v714, %v713
        %v779 = vpack.c.b16 %v716, %v715
        %v780 = vpack.c.b16 %v718, %v717
        %v781 = vpack.c.b16 %v720, %v719
        %v782 = vpack.c.b16 %v722, %v721
        %v783 = vpack.c.b16 %v724, %v723
        %v784 = vpack.c.b16 %v726, %v725
        %v785 = vpack.c.b16 %v728, %v727
        %v786 = vpack.c.b16 %v730, %v729
        %v787 = vpack.c.b16 %v732, %v731
        %v788 = vpack.c.b16 %v734, %v733
        %v789 = vpack.c.b16 %v736, %v735
        %v790 = vpack.c.b16 %v738, %v737
        %v791 = vpack.c.b16 %v740, %v739
        %v792 = vpack.c.b16 %v742, %v741
        %v793 = vpack.c.b16 %v744, %v743
        %v794 = vpack.c.b16 %v746, %v745
        %843 = vst [vmem:[%s173] sm:$0xff] %v747
        %844 = vst [vmem:[%s173 + $0x8] sm:$0xff] %v748
        %845 = vst [vmem:[%s173 + $0x10] sm:$0xff] %v749
        %846 = vst [vmem:[%s173 + $0x18] sm:$0xff] %v750
        %847 = vst [vmem:[%s173 + $0x20] sm:$0xff] %v751
        %848 = vst [vmem:[%s173 + $0x28] sm:$0xff] %v752
        %849 = vst [vmem:[%s173 + $0x30] sm:$0xff] %v753
        %850 = vst [vmem:[%s173 + $0x38] sm:$0xff] %v754
        %851 = vst [vmem:[%s173 + $0x40] sm:$0xff] %v755
        %852 = vst [vmem:[%s173 + $0x48] sm:$0xff] %v756
        %853 = vst [vmem:[%s173 + $0x50] sm:$0xff] %v757
        %854 = vst [vmem:[%s173 + $0x58] sm:$0xff] %v758
        %855 = vst [vmem:[%s173 + $0x60] sm:$0xff] %v759
        %856 = vst [vmem:[%s173 + $0x68] sm:$0xff] %v760
        %857 = vst [vmem:[%s173 + $0x70] sm:$0xff] %v761
        %858 = vst [vmem:[%s173 + $0x78] sm:$0xff] %v762
        %859 = vst [vmem:[%s173 + $0x80] sm:$0xff] %v763
        %860 = vst [vmem:[%s173 + $0x88] sm:$0xff] %v764
        %861 = vst [vmem:[%s173 + $0x90] sm:$0xff] %v765
        %862 = vst [vmem:[%s173 + $0x98] sm:$0xff] %v766
        %863 = vst [vmem:[%s173 + $0xa0] sm:$0xff] %v767
        %864 = vst [vmem:[%s173 + $0xa8] sm:$0xff] %v768
        %865 = vst [vmem:[%s173 + $0xb0] sm:$0xff] %v769
        %866 = vst [vmem:[%s173 + $0xb8] sm:$0xff] %v770
        %867 = vst [vmem:[%s173 + $0xc0] sm:$0xff] %v771
        %868 = vst [vmem:[%s173 + $0xc8] sm:$0xff] %v772
        %869 = vst [vmem:[%s173 + $0xd0] sm:$0xff] %v773
        %870 = vst [vmem:[%s173 + $0xd8] sm:$0xff] %v774
        %871 = vst [vmem:[%s173 + $0xe0] sm:$0xff] %v775
        %872 = vst [vmem:[%s173 + $0xe8] sm:$0xff] %v776
        %873 = vst [vmem:[%s173 + $0xf0] sm:$0xff] %v777
        %874 = vst [vmem:[%s173 + $0xf8] sm:$0xff] %v778
        %875 = vst [vmem:[%s173 + $0x100] sm:$0xff] %v779
        %876 = vst [vmem:[%s173 + $0x108] sm:$0xff] %v780
        %877 = vst [vmem:[%s173 + $0x110] sm:$0xff] %v781
        %878 = vst [vmem:[%s173 + $0x118] sm:$0xff] %v782
        %879 = vst [vmem:[%s173 + $0x120] sm:$0xff] %v783
        %880 = vst [vmem:[%s173 + $0x128] sm:$0xff] %v784
        %881 = vst [vmem:[%s173 + $0x130] sm:$0xff] %v785
        %882 = vst [vmem:[%s173 + $0x138] sm:$0xff] %v786
        %883 = vst [vmem:[%s173 + $0x140] sm:$0xff] %v787
        %884 = vst [vmem:[%s173 + $0x148] sm:$0xff] %v788
        %885 = vst [vmem:[%s173 + $0x150] sm:$0xff] %v789
        %886 = vst [vmem:[%s173 + $0x158] sm:$0xff] %v790
        %887 = vst [vmem:[%s173 + $0x160] sm:$0xff] %v791
        %888 = vst [vmem:[%s173 + $0x168] sm:$0xff] %v792
        %889 = vst [vmem:[%s173 + $0x170] sm:$0xff] %v793
        %890 = vst [vmem:[%s173 + $0x178] sm:$0xff] %v794
        %s891 = sand.u32 %s79, 1
        %s892 = scalar_lea.sflag [#allocation4], %s891
        %s893 = sand.u32 %s79, 1
        %s894 = smul.addr %s893, 384
        %s895 = scalar_lea.vmem [#allocation5], %s894
        // Predicated region
        $region29: #{tpu_custom_call.1} parent=23 // pred_check
          %p896 = pneg %p89
        $region30: #{tpu_custom_call.1} parent=23 // pred_check_branch
          %898 = sbr.rel (%p896) target = $region32
        $region31: #{tpu_custom_call.1} parent=23 // pred_region
          %s899 = smul.u32 48, %s25
          %s900 = smul.u32 2, %s24
          %s901 = ssub.s32 80, %s899
          %p902 = scmp.lt.s32.totalorder %s901, 48
          %s903 = scalar_select %p902, %s901, 48
          %s904 = smul.u32 64, %s903
          %s905 = smul.u32 %s904, 2
          %s907 = ssub.s32 6144, %s905
          %908 = vsyncadd %s892, %s907
          %p909 = scmp.ne.s32.totalorder 0, %s905
          %s910 = smul.addr %s899, 2
          %s911 = sadd.s32 %s900, %s910
          %s912 = smul.addr %s23, 160
          %s913 = sadd.s32 %s911, %s912
          %s914 = smul.addr %s913, 64
          %s915 = scalar_lea.hbm %s1, %s914
          %s916 = smul.u32 8, %s903
          %s917 = sshll.u32 %s895, 4
          %s918 = int_to_ptr.vmem [resolvable:$true] %s917
          %s919 = sshll.u32 %s916, 4
          %923 = dma.vmem_to_hbm [thread:$0]  (%p909), %s918, %s919, %s915, %s892, 128, 128, 8
        $region32: #{tpu_custom_call.1} parent=23 // pred_fallthru
          _
      $region24: #{tpu_custom_call.1} parent=5 // pred_fallthru
        _
      %p924 = scmp.le.s32.totalorder 2, %s13
      // Predicated region
      $region33: #{tpu_custom_call.1} parent=5 // pred_check
        %p925 = pneg %p924
      $region34: #{tpu_custom_call.1} parent=5 // pred_check_branch
        %927 = sbr.rel (%p925) target = $region36
      $region35: #{tpu_custom_call.1} parent=5 // pred_region
        %s928 = ssub.s32 %s13, 2
        // Predicated region
        $region37: #{tpu_custom_call.1} parent=35 // pred_check
          %p929 = pneg %p95
        $region38: #{tpu_custom_call.1} parent=35 // pred_check_branch
          %931 = sbr.rel (%p929) target = $region40
        $region39: #{tpu_custom_call.1} parent=35 // pred_region
          %s932 = sand.u32 %s80, 1
          %s933 = scalar_lea.sflag [#allocation4], %s932
          %s934 = sand.u32 %s80, 1
          %s935 = smul.addr %s934, 384
          %s936 = scalar_lea.vmem [#allocation5], %s935
          %937 = dma.done %s933, 6144
        $region40: #{tpu_custom_call.1} parent=35 // pred_fallthru
          _
      $region36: #{tpu_custom_call.1} parent=5 // pred_fallthru
        _
    $region6: #{tpu_custom_call.1} parent=1 // loop_footer
      %s17 = sadd.s32 1, %s13
    $region7: #{tpu_custom_call.1} parent=1 // loop_footer_branch
      %12 = sbr.rel target = $region3
    $region8: #{tpu_custom_call.1} parent=1 // loop_exit
      _
    %938 = vsyncpa [#allocation3], 1
    %s939 = scalar_lea.sflag [#allocation3], 1
    %940 = vsyncpa %s939, 1
    %941 = vsyncpa [#allocation4], 1
    %s942 = scalar_lea.sflag [#allocation4], 1
    %943 = vsyncpa %s942, 1

</llo_original>
